<compile_context>
chip_gen: v7x
topology: tpu7x:2x2x1
jax: 0.10.0
libtpu: 0.0.40
codegen_flags: <defaults>
</compile_context>

<pallas_src>
import jax
import jax.numpy as jnp
import numpy as np
from jax.experimental import pallas as pl
from jax.experimental.pallas import tpu as pltpu


def _make_clip_kernel(width, height, dtype):
    """Build a kernel closing over the static clamp bounds (no extra operands)."""

    def kernel(boxes_ref, out_ref):
        # boxes_ref / out_ref: (tr, 128) tile of the row-major flattened boxes.
        # 128 % 4 == 0, so lane l of every row holds coordinate (l % 4):
        #   x1 y1 x2 y2 | x1 y1 x2 y2 | ...
        coord = jax.lax.broadcasted_iota(jnp.int32, (1, 128), 1) % 4
        lo = jnp.where(coord < 2, 0.0, -jnp.inf).astype(dtype)  # x1,y1: max(.,0)
        hi = jnp.where(
            coord == 2,
            float(width),
            jnp.where(coord == 3, float(height), jnp.inf),
        ).astype(dtype)  # x2: min(.,W); y2: min(.,H)
        out_ref[...] = jnp.minimum(jnp.maximum(boxes_ref[...], lo), hi)

    return kernel


def _choose_tile_rows(R, tile_rows):
    """Pick a row-tile size: large, multiple of 16, >= 2 grid steps if possible."""
    if R <= 16:
        return R  # one full-extent block (block dims == array dims is legal)
    # Aim for at least 2 grid steps so v7x's two TensorCores both get work.
    tr = min(tile_rows, -(-R // 2))   # cdiv(R, 2) cap
    tr = -(-tr // 16) * 16            # round up to a multiple of 16 rows
    return min(tr, R)


def _clip_boxes_jnp(boxes, height, width):
    """Single fused XLA elementwise pass (fallback for tiny / ragged inputs)."""
    dtype = boxes.dtype
    lo = jnp.array([0.0, 0.0, -np.inf, -np.inf], dtype)
    hi = jnp.array([np.inf, np.inf, float(width), float(height)], dtype)
    return jnp.clip(boxes, lo, hi)


def clip_boxes(boxes, img, *, tile_rows=1024, min_pallas_bytes=256 * 1024):
    """Functional ClipBoxes forward.

    boxes: (B, N, 4) float array; img: (B, C, H, W) (only its shape is used).
    Returns the clipped boxes with the same shape and dtype as `boxes`.
    """
    batch, _, height, width = img.shape
    B, N, C = boxes.shape
    assert C == 4 and B == batch
    dtype = boxes.dtype

    total = B * N * 4
    nbytes = total * boxes.dtype.itemsize

    # Fallbacks (still exactly 1 read + 1 write of HBM, fused by XLA):
    #  * tiny inputs: fixed pallas_call / pipeline setup overhead dominates.
    #  * ragged inputs (total not a multiple of the 128-lane width): avoids the
    #    extra pad + slice full-array passes of the previous version.
    if nbytes < min_pallas_bytes or total % 128 != 0:
        return _clip_boxes_jnp(boxes, height, width)

    R = total // 128
    x = boxes.reshape(R, 128)  # free row-major view; batch folded into rows

    tr = _choose_tile_rows(R, tile_rows)
    grid = (pl.cdiv(R, tr),)
    spec = pl.BlockSpec((tr, 128), lambda r: (r, 0))

    out = pl.pallas_call(
        _make_clip_kernel(width, height, dtype),
        out_shape=jax.ShapeDtypeStruct((R, 128), dtype),
        grid=grid,
        in_specs=[spec],
        out_specs=spec,
        input_output_aliases={0: 0},  # in-place clamp (PyTorch in-place semantics)
        compiler_params=pltpu.CompilerParams(
            dimension_semantics=("parallel",)
        ),
        cost_estimate=pl.CostEstimate(
            flops=2 * total,            # one max + one min per element
            transcendentals=0,
            bytes_accessed=2 * nbytes,  # 1 read + 1 write
        ),
    )(x)

    return out.reshape(B, N, 4)


def _clip_boxes_ref(boxes, img):
    _, _, h, w = img.shape
    dt = boxes.dtype
    x1 = jnp.maximum(boxes[:, :, 0], jnp.asarray(0.0, dt))
    y1 = jnp.maximum(boxes[:, :, 1], jnp.asarray(0.0, dt))
    x2 = jnp.minimum(boxes[:, :, 2], jnp.asarray(w, dt))
    y2 = jnp.minimum(boxes[:, :, 3], jnp.asarray(h, dt))
    return jnp.stack([x1, y1, x2, y2], axis=-1)


if __name__ == "__main__":
    key = jax.random.PRNGKey(0)
    k1, k2 = jax.random.split(key)

    C, H, W = 3, 64, 80  # image: height=64, width=80 (only the shape matters)

    # --- Pallas path: small but lane-aligned (B*N*4 % 128 == 0) ---------------
    B, N = 2, 512
    img = jnp.zeros((B, C, H, W), jnp.float32)
    boxes = jax.random.uniform(
        k1, (B, N, 4), jnp.float32, minval=-30.0, maxval=120.0
    )
    out = jax.block_until_ready(clip_boxes(boxes, img, min_pallas_bytes=0))
    ref = _clip_boxes_ref(boxes, img)
    assert out.shape == (B, N, 4) and out.dtype == boxes.dtype
    assert jnp.allclose(out, ref, rtol=0.0, atol=0.0), "f32 pallas mismatch"

    # --- Pallas path, bf16 (dtype-generic streaming, no upcast) --------------
    boxes_bf = boxes.astype(jnp.bfloat16)
    out_bf = jax.block_until_ready(clip_boxes(boxes_bf, img, min_pallas_bytes=0))
    ref_bf = _clip_boxes_ref(boxes_bf, img)
    assert out_bf.dtype == jnp.bfloat16
    assert jnp.allclose(out_bf, ref_bf, rtol=0.0, atol=0.0), "bf16 pallas mismatch"

    # --- Fallback path: tiny + ragged (B*N*4 % 128 != 0) ---------------------
    B2, N2 = 2, 100
    img2 = jnp.zeros((B2, C, H, W), jnp.float32)
    boxes2 = jax.random.uniform(
        k2, (B2, N2, 4), jnp.float32, minval=-30.0, maxval=120.0
    )
    out2 = jax.block_until_ready(clip_boxes(boxes2, img2))
    ref2 = _clip_boxes_ref(boxes2, img2)
    assert jnp.allclose(out2, ref2, rtol=0.0, atol=0.0), "fallback mismatch"

    print("KERNEL_OK")
</pallas_src>

<mosaic_0001>
module attributes {stable_mosaic.version = 11 : i64} {
  func.func @kernel(%arg0: i32, %arg1: memref<16x128xf32, #tpu.memory_space<vmem>>, %arg2: memref<16x128xf32, #tpu.memory_space<vmem>>) attributes {dimension_semantics = [#tpu.dimension_semantics<parallel>], iteration_bounds = array<i64: 2>, scalar_prefetch = 0 : i64, scratch_operands = 0 : i64, tpu.core_type = #tpu.core_type<tc>, window_params = [{transform_indices = @transform_0, window_bounds = array<i64: 16, 128>}, {transform_indices = @transform_1, window_bounds = array<i64: 16, 128>}]} {
    %0 = tpu.iota {dimensions = array<i32: 1>} : vector<1x128xi32>
    %c4_i32 = arith.constant 4 : i32
    %c0_i32 = arith.constant 0 : i32
    %1 = arith.cmpi eq, %c4_i32, %c0_i32 : i32
    %c1_i32 = arith.constant 1 : i32
    %2 = arith.select %1, %c1_i32, %c4_i32 : i32
    %3 = vector.broadcast %2 : i32 to vector<1x128xi32>
    %4 = arith.remsi %0, %3 : vector<1x128xi32>
    %c0_i32_0 = arith.constant 0 : i32
    %5 = vector.broadcast %c0_i32_0 : i32 to vector<1x128xi32>
    %6 = arith.cmpi ne, %4, %5 : vector<1x128xi32>
    %c0_i32_1 = arith.constant 0 : i32
    %7 = vector.broadcast %c0_i32_1 : i32 to vector<1x128xi32>
    %8 = arith.cmpi slt, %4, %7 : vector<1x128xi32>
    %c0_i32_2 = arith.constant 0 : i32
    %9 = arith.cmpi slt, %2, %c0_i32_2 : i32
    %10 = vector.broadcast %9 : i1 to vector<1x128xi1>
    %11 = vector.broadcast %10 : vector<1x128xi1> to vector<1x128xi1>
    %12 = arith.xori %8, %11 : vector<1x128xi1>
    %13 = arith.andi %12, %6 : vector<1x128xi1>
    %14 = vector.broadcast %2 : i32 to vector<1x128xi32>
    %15 = arith.addi %4, %14 : vector<1x128xi32>
    %16 = arith.select %13, %15, %4 : vector<1x128xi1>, vector<1x128xi32>
    %c2_i32 = arith.constant 2 : i32
    %17 = vector.broadcast %c2_i32 : i32 to vector<1x128xi32>
    %18 = arith.cmpi slt, %16, %17 : vector<1x128xi32>
    %cst = arith.constant 0.000000e+00 : f32
    %cst_3 = arith.constant 0xFF800000 : f32
    %19 = vector.broadcast %cst : f32 to vector<1x128xf32>
    %20 = vector.broadcast %cst_3 : f32 to vector<1x128xf32>
    %21 = arith.select %18, %19, %20 : vector<1x128xi1>, vector<1x128xf32>
    %c2_i32_4 = arith.constant 2 : i32
    %22 = vector.broadcast %c2_i32_4 : i32 to vector<1x128xi32>
    %23 = arith.cmpi eq, %16, %22 : vector<1x128xi32>
    %c3_i32 = arith.constant 3 : i32
    %24 = vector.broadcast %c3_i32 : i32 to vector<1x128xi32>
    %25 = arith.cmpi eq, %16, %24 : vector<1x128xi32>
    %cst_5 = arith.constant 6.400000e+01 : f32
    %cst_6 = arith.constant 0x7F800000 : f32
    %26 = vector.broadcast %cst_5 : f32 to vector<1x128xf32>
    %27 = vector.broadcast %cst_6 : f32 to vector<1x128xf32>
    %28 = arith.select %25, %26, %27 : vector<1x128xi1>, vector<1x128xf32>
    %cst_7 = arith.constant 8.000000e+01 : f32
    %29 = vector.broadcast %cst_7 : f32 to vector<1x128xf32>
    %30 = arith.select %23, %29, %28 : vector<1x128xi1>, vector<1x128xf32>
    %c0 = arith.constant 0 : index
    %c0_8 = arith.constant 0 : index
    %31 = vector.load %arg1[%c0, %c0_8] : memref<16x128xf32, #tpu.memory_space<vmem>>, vector<16x128xf32>
    %32 = vector.broadcast %21 : vector<1x128xf32> to vector<16x128xf32>
    %33 = arith.maximumf %31, %32 : vector<16x128xf32>
    %34 = vector.broadcast %30 : vector<1x128xf32> to vector<16x128xf32>
    %35 = arith.minimumf %33, %34 : vector<16x128xf32>
    %c0_9 = arith.constant 0 : index
    %c0_10 = arith.constant 0 : index
    %36 = vector.load %arg2[%c0_9, %c0_10] : memref<16x128xf32, #tpu.memory_space<vmem>>, vector<16x128xf32>
    tpu.vector_store %arg2[%c0_9, %c0_10], %35 {strides = array<i32>} : memref<16x128xf32, #tpu.memory_space<vmem>>, vector<16x128xf32>,
    return
  }
  func.func @transform_0(%arg0: i32) -> (i32, i32) {
    %c0_i32 = arith.constant 0 : i32
    %c0_i32_0 = arith.constant 0 : i32
    return %arg0, %c0_i32 : i32, i32
  }
  func.func @transform_1(%arg0: i32) -> (i32, i32) {
    %c0_i32 = arith.constant 0 : i32
    %c0_i32_0 = arith.constant 0 : i32
    return %arg0, %c0_i32 : i32, i32
  }
}

</mosaic_0001>

<llo_original>
// kernel: tpu_custom_call.1
$region0: #{tpu_custom_call.1}
  #allocation0 [shape = 'u32[]', space=smem, size = 0x4, offset = 0x4, fixed_abs, tag = 'smem constant byte address 0x4 - core index']
  #allocation1 [shape = 'u32[144,128]{1,0:T(1,128)}', space=vmem, size = 0x12000, scoped, tag = 'internal scratch']
  %s0 = inlined_call_operand.hbm [shape: f32[32,128], index: 0, kind: input, shape index: {}, may-alias: {0,1}]
  %s1 = inlined_call_operand.hbm [shape: f32[32,128], index: 1, kind: output, shape index: {}, may-alias: {0,1}]
  %s2 = sld [smem:[#allocation0]]
  $region41: #{tpu_custom_call.1} parent=0
    _
  %s4 = ssub.s32 1, %s2
  %s5 = scalar_select 0, %s4, %s2
  $region1: #{tpu_custom_call.1} parent=0
    #allocation2 [shape = 'u8[16384]{0}', space=vmem, size = 0x4000, scoped, tag = 'input window, operand 0']
    #allocation3 [shape = 's32[2]{0}', space=sflag, size = 0x8, scoped, tag = 'scoped memory for tpu_custom_call.1']
    #allocation4 [shape = 's32[2]{0}', space=sflag, size = 0x8, scoped, tag = 'scoped memory for tpu_custom_call.1']
    #allocation5 [shape = 'u8[16384]{0}', space=vmem, size = 0x4000, scoped, tag = 'output window, operand 0']
    %6 = vsyncpa [#allocation3], 0
    %s7 = scalar_lea.sflag [#allocation3], 1
    %8 = vsyncpa %s7, 0
    %9 = vsyncpa [#allocation4], 0
    %s10 = scalar_lea.sflag [#allocation4], 1
    %11 = vsyncpa %s10, 0
    loop: start=0, step=1, limit=4
    $region2: #{tpu_custom_call.1} parent=1 // loop_pre_header
      _
    $region3: #{tpu_custom_call.1} parent=1 // loop_header
      %s13 = sphi 0, %s17
      %p14 = scmp.ge.s32.totalorder %s13, 4
      %s23 = sphi 0, %s25
      %s26 = sphi 0, %s23
      %s27 = sphi 0, %s26
      %s43 = sphi 0, %s27
      %s49 = sphi 0, %s51
      %s52 = sphi 0, %s49
      %s53 = sphi 0, %s52
      %s69 = sphi 0, %s53
    $region4: #{tpu_custom_call.1} parent=1 // loop_header_branch
      %16 = sbr.rel (%p14) target = $region8
    $region5: #{tpu_custom_call.1} parent=1 // loop_body
      %s18 = ssub.s32 %s13, 1
      %s19 = ssub.s32 %s13, 2
      %s20 = sadd.s32 %s13, 1
      %s21 = ssub.s32 %s13, %s20
      %p22 = scmp.eq.s32.totalorder %s21, 0
      %s24 = sadd.s32 %s23, 1
      %s25 = scalar_select %p22, %s23, %s24
      %p28 = pneg %p22
      %p29 = scmp.eq.s32.totalorder %s13, 1
      %p30 = por %p28, %p29
      %p31 = scmp.ne.s32.totalorder %s23, %s26
      %p32 = scmp.eq.s32.totalorder %s13, 0
      %p33 = por %p31, %p32
      %p34 = scmp.ne.s32.totalorder %s23, %s26
      %p35 = scmp.eq.s32.totalorder %s18, 1
      %p36 = por %p34, %p35
      %p37 = scmp.ne.s32.totalorder %s26, %s27
      %p38 = scmp.eq.s32.totalorder %s18, 0
      %p39 = por %p37, %p38
      %p40 = scmp.ne.s32.totalorder %s26, %s27
      %p41 = scmp.eq.s32.totalorder %s19, 1
      %p42 = por %p40, %p41
      %p44 = scmp.ne.s32.totalorder %s27, %s43
      %p45 = scmp.eq.s32.totalorder %s19, 0
      %p46 = por %p44, %p45
      %s47 = ssub.s32 %s13, %s20
      %p48 = scmp.eq.s32.totalorder %s47, 0
      %s50 = sadd.s32 %s49, 1
      %s51 = scalar_select %p48, %s49, %s50
      %p54 = pneg %p48
      %p55 = scmp.eq.s32.totalorder %s13, 1
      %p56 = por %p54, %p55
      %p57 = scmp.ne.s32.totalorder %s49, %s52
      %p58 = scmp.eq.s32.totalorder %s13, 0
      %p59 = por %p57, %p58
      %p60 = scmp.ne.s32.totalorder %s49, %s52
      %p61 = scmp.eq.s32.totalorder %s18, 1
      %p62 = por %p60, %p61
      %p63 = scmp.ne.s32.totalorder %s52, %s53
      %p64 = scmp.eq.s32.totalorder %s18, 0
      %p65 = por %p63, %p64
      %p66 = scmp.ne.s32.totalorder %s52, %s53
      %p67 = scmp.eq.s32.totalorder %s19, 1
      %p68 = por %p66, %p67
      %p70 = scmp.ne.s32.totalorder %s53, %s69
      %p71 = scmp.eq.s32.totalorder %s19, 0
      %p72 = por %p70, %p71
      %p73 = scmp.le.s32.totalorder 1, %s13
      %p74 = scmp.lt.s32.totalorder %s13, 3
      %p75 = pnand %p73, %p74
      %p76 = pneg %p75
      // Predicated region
      $region9: #{tpu_custom_call.1} parent=5 // pred_check
        _
      $region10: #{tpu_custom_call.1} parent=5 // pred_check_branch
        %78 = sbr.rel (%p75) target = $region12
      $region11: #{tpu_custom_call.1} parent=5 // pred_region
        %s79 = ssub.s32 %s13, 1
      $region12: #{tpu_custom_call.1} parent=5 // pred_fallthru
        _
      %p80 = scmp.lt.s32.totalorder %s13, 2
      // Predicated region
      $region13: #{tpu_custom_call.1} parent=5 // pred_check
        %p81 = pneg %p80
      $region14: #{tpu_custom_call.1} parent=5 // pred_check_branch
        %83 = sbr.rel (%p81) target = $region16
      $region15: #{tpu_custom_call.1} parent=5 // pred_region
        // Predicated region
        $region17: #{tpu_custom_call.1} parent=15 // pred_check
          %p84 = pneg %p33
        $region18: #{tpu_custom_call.1} parent=15 // pred_check_branch
          %86 = sbr.rel (%p84) target = $region20
        $region19: #{tpu_custom_call.1} parent=15 // pred_region
          %s87 = sand.u32 %s23, 1
          %s88 = scalar_lea.sflag [#allocation3], %s87
          %s89 = sand.u32 %s23, 1
          %s90 = smul.addr %s89, 16
          %s91 = scalar_lea.vmem [#allocation2], %s90
          %s92 = smul.u32 2, %s13
          %s94 = ssub.s32 256, 256
          %95 = vsyncadd %s88, %s94
          %s96 = smul.addr %s92, 128
          %s97 = scalar_lea.hbm %s0, %s96
          %s98 = sshll.u32 %s91, 4
          %s99 = int_to_ptr.vmem [resolvable:$true] %s98
          %104 = dma.hbm_to_vmem [thread:$0]  %s97, 256, %s99, %s88, 128, 128, 8
        $region20: #{tpu_custom_call.1} parent=15 // pred_fallthru
          _
      $region16: #{tpu_custom_call.1} parent=5 // pred_fallthru
        _
      %p105 = scmp.le.s32.totalorder 1, %s13
      %p106 = scmp.lt.s32.totalorder %s13, 3
      %p107 = pnand %p105, %p106
      %p108 = pneg %p107
      // Predicated region
      $region21: #{tpu_custom_call.1} parent=5 // pred_check
        _
      $region22: #{tpu_custom_call.1} parent=5 // pred_check_branch
        %110 = sbr.rel (%p107) target = $region24
      $region23: #{tpu_custom_call.1} parent=5 // pred_region
        %s111 = ssub.s32 %s13, 1
        %s112 = sand.u32 %s26, 1
        %s113 = scalar_lea.sflag [#allocation3], %s112
        %s114 = sand.u32 %s26, 1
        %s115 = smul.addr %s114, 16
        %s116 = scalar_lea.vmem [#allocation2], %s115
        // Predicated region
        $region25: #{tpu_custom_call.1} parent=23 // pred_check
          %p117 = pneg %p39
        $region26: #{tpu_custom_call.1} parent=23 // pred_check_branch
          %119 = sbr.rel (%p117) target = $region28
        $region27: #{tpu_custom_call.1} parent=23 // pred_region
          %120 = dma.done %s113, 256
        $region28: #{tpu_custom_call.1} parent=23 // pred_fallthru
          _
        %s121 = sand.u32 %s26, 1
        %s122 = scalar_lea.sflag [#allocation3], %s121
        %s123 = sand.u32 %s26, 1
        %s124 = smul.addr %s123, 16
        %s125 = scalar_lea.vmem [#allocation2], %s124
        %p126 = pneg %p39
        %p127 = pneg %p36
        %p128 = pneg %p65
        %p129 = pneg %p62
        %s130 = sand.u32 %s52, 1
        %s131 = scalar_lea.sflag [#allocation4], %s130
        %s132 = sand.u32 %s52, 1
        %s133 = smul.addr %s132, 16
        %s134 = scalar_lea.vmem [#allocation5], %s133
        %s135 = smul.u32 2, %s18
        %s136 = smul.u32 2, %s18
        %v137 = vlaneseq
        %v138 = vand.u32 %v137, 127
        %vm139 = vcmp.lt.s32.totalorder %v138, 0
        %v140 = vsub.s32 0, %v138
        %v141 = vsel %vm139, %v140, %v138
        %v142 = vshrl.u32 %v141, 2
        %v143 = vand.u32 %v141, 3
        %v144 = vsub.s32 0, %v143
        %v145 = vsel %vm139, %v144, %v143
        %vm146 = vcmp.ne.s32.totalorder %v145, 0
        %vm147 = vcmp.lt.s32.totalorder %v145, 0
        %vm148 = vmand %vm147, %vm146
        %v149 = vadd.s32 %v145, 4
        %v150 = vsel %vm148, %v149, %v145
        %vm151 = vcmp.lt.s32.totalorder %v150, 2
        %v152 = vsel %vm151, 0.0, -inf
        %vm153 = vcmp.eq.s32.totalorder %v150, 2
        %vm154 = vcmp.eq.s32.totalorder %v150, 3
        %v155 = vsel %vm154, 64.0, inf
        %v156 = vsel %vm153, 80.0, %v155
        %v157 = vld [vmem:[%s116] sm:$0xff]
        %v158 = vld [vmem:[%s116 + $0x8] sm:$0xff]
        %v159 = vmax.f32 %v157, %v152
        %v160 = vmax.f32 %v158, %v152
        %v161 = vmin.f32 %v159, %v156
        %v162 = vmin.f32 %v160, %v156
        %163 = vst [vmem:[%s134] sm:$0xff] %v161
        %164 = vst [vmem:[%s134 + $0x8] sm:$0xff] %v162
        %s165 = sand.u32 %s52, 1
        %s166 = scalar_lea.sflag [#allocation4], %s165
        %s167 = sand.u32 %s52, 1
        %s168 = smul.addr %s167, 16
        %s169 = scalar_lea.vmem [#allocation5], %s168
        // Predicated region
        $region29: #{tpu_custom_call.1} parent=23 // pred_check
          %p170 = pneg %p62
        $region30: #{tpu_custom_call.1} parent=23 // pred_check_branch
          %172 = sbr.rel (%p170) target = $region32
        $region31: #{tpu_custom_call.1} parent=23 // pred_region
          %s173 = smul.u32 2, %s18
          %s175 = ssub.s32 256, 256
          %176 = vsyncadd %s166, %s175
          %s177 = smul.addr %s173, 128
          %s178 = scalar_lea.hbm %s1, %s177
          %s179 = sshll.u32 %s169, 4
          %s180 = int_to_ptr.vmem [resolvable:$true] %s179
          %185 = dma.vmem_to_hbm [thread:$0]  %s180, 256, %s178, %s166, 128, 128, 8
        $region32: #{tpu_custom_call.1} parent=23 // pred_fallthru
          _
      $region24: #{tpu_custom_call.1} parent=5 // pred_fallthru
        _
      %p186 = scmp.le.s32.totalorder 2, %s13
      // Predicated region
      $region33: #{tpu_custom_call.1} parent=5 // pred_check
        %p187 = pneg %p186
      $region34: #{tpu_custom_call.1} parent=5 // pred_check_branch
        %189 = sbr.rel (%p187) target = $region36
      $region35: #{tpu_custom_call.1} parent=5 // pred_region
        %s190 = ssub.s32 %s13, 2
        // Predicated region
        $region37: #{tpu_custom_call.1} parent=35 // pred_check
          %p191 = pneg %p68
        $region38: #{tpu_custom_call.1} parent=35 // pred_check_branch
          %193 = sbr.rel (%p191) target = $region40
        $region39: #{tpu_custom_call.1} parent=35 // pred_region
          %s194 = sand.u32 %s53, 1
          %s195 = scalar_lea.sflag [#allocation4], %s194
          %s196 = sand.u32 %s53, 1
          %s197 = smul.addr %s196, 16
          %s198 = scalar_lea.vmem [#allocation5], %s197
          %199 = dma.done %s195, 256
        $region40: #{tpu_custom_call.1} parent=35 // pred_fallthru
          _
      $region36: #{tpu_custom_call.1} parent=5 // pred_fallthru
        _
    $region6: #{tpu_custom_call.1} parent=1 // loop_footer
      %s17 = sadd.s32 1, %s13
    $region7: #{tpu_custom_call.1} parent=1 // loop_footer_branch
      %12 = sbr.rel target = $region3
    $region8: #{tpu_custom_call.1} parent=1 // loop_exit
      _
    %200 = vsyncpa [#allocation3], 1
    %s201 = scalar_lea.sflag [#allocation3], 1
    %202 = vsyncpa %s201, 1
    %203 = vsyncpa [#allocation4], 1
    %s204 = scalar_lea.sflag [#allocation4], 1
    %205 = vsyncpa %s204, 1

</llo_original>
